<compile_context>
chip_gen: v5e
topology: v5e:2x2
jax: 0.10.0
libtpu: 0.0.40
codegen_flags: <defaults>
</compile_context>

<pallas_src>
import functools

import jax
import jax.numpy as jnp
from jax.experimental import pallas as pl
from jax.experimental.pallas import tpu as pltpu


def _round_up(x, m):
    return (x + m - 1) // m * m


def _fused_recurrence_kernel(key_ref, wkey_ref, wprev_ref, beff_ref, out_ref, *, p):
    """key_ref: (bt, Dp); wkey/wprev: (Dp, Dp); beff: (1, Dp); out: (bt, Dp)."""
    key = key_ref[...]                                                  # (bt, Dp)
    w_prev = wprev_ref[...]                                             # (Dp, Dp)

    # Loop-invariant term (key contribution + fused bias), computed once.
    const = jnp.dot(key, wkey_ref[...],
                    preferred_element_type=jnp.float32) + beff_ref[...]  # (bt, Dp)

    # iteration 1: value = cat(key, key)  ->  x = const + key @ W_prev
    x = const + jnp.dot(key, w_prev, preferred_element_type=jnp.float32)

    # iterations 2 .. p-1: value = cat(key, prev_out).  p is static & small, so
    # fully unroll the dependent chain (gives the LLO scheduler full visibility).
    for _ in range(2, p):
        x = const + jnp.dot(x, w_prev, preferred_element_type=jnp.float32)

    # TODO(synk): nn.Dropout(0.1) on attention probabilities omitted
    # (inference/eval mode; the probabilities are identically 1 anyway).
    out_ref[...] = jnp.maximum(x, 0.0)                                   # ReLU


def text_attention_layer_forward(text, params, *, h, d_k, d_v):
    """text: (b_s, p, 1, semantic_feat) -- mirrors the torch module's forward."""
    del h, d_k  # Q/K projections are mathematically dead (softmax over 1 key == 1).
    b_s, p, _, d_model = text.shape
    assert p >= 2, "module forward requires at least 2 positions (reads text[:, 1])"
    assert d_v == 2 * d_model, "module requires d_v == 2 * d_model"

    _wq, _bq, _wk, _bk, wv, bv, wo, bo = params

    # One-time parameter fusion:  out = value @ W_eff + b_eff
    w_eff = (wv.T.astype(jnp.float32) @ wo.T.astype(jnp.float32))        # (d_v, d_model)
    b_eff = (bv.astype(jnp.float32) @ wo.T.astype(jnp.float32)
             + bo.astype(jnp.float32))                                   # (d_model,)
    w_key = w_eff[:d_model, :]                                           # key half
    w_prev = w_eff[d_model:, :]                                          # prev-output half

    # Only text[:, 0, :] (the key) enters the computation.
    key = text[:, 0, 0, :].astype(jnp.float32)                           # (b_s, d_model)

    # Pad to dense TPU tiles: sublanes multiple of 8, lanes multiple of 128.
    dm_pad = _round_up(d_model, 128)
    bt = min(_round_up(b_s, 8), 128)                                     # batch tile
    b_pad = _round_up(b_s, bt)

    key_p = jnp.pad(key, ((0, b_pad - b_s), (0, dm_pad - d_model)))
    wkey_p = jnp.pad(w_key, ((0, dm_pad - d_model), (0, dm_pad - d_model)))
    wprev_p = jnp.pad(w_prev, ((0, dm_pad - d_model), (0, dm_pad - d_model)))
    beff_p = jnp.pad(b_eff, (0, dm_pad - d_model)).reshape(1, dm_pad)

    kernel = functools.partial(_fused_recurrence_kernel, p=p)
    out_pad = pl.pallas_call(
        kernel,
        out_shape=jax.ShapeDtypeStruct((b_pad, dm_pad), jnp.float32),
        grid_spec=pltpu.PrefetchScalarGridSpec(
            num_scalar_prefetch=0,
            grid=(b_pad // bt,),
            in_specs=[
                pl.BlockSpec((bt, dm_pad), lambda i: (i, 0)),       # key (batch-tiled)
                pl.BlockSpec((dm_pad, dm_pad), lambda i: (0, 0)),   # W_key (resident)
                pl.BlockSpec((dm_pad, dm_pad), lambda i: (0, 0)),   # W_prev (resident)
                pl.BlockSpec((1, dm_pad), lambda i: (0, 0)),        # b_eff (resident)
            ],
            out_specs=pl.BlockSpec((bt, dm_pad), lambda i: (i, 0)),
        ),
        compiler_params=pltpu.CompilerParams(
            dimension_semantics=("parallel",)),
    )(key_p, wkey_p, wprev_p, beff_p)

    return out_pad[:b_s, :d_model]


def _init_params(key, d_model, d_k, d_v, h):
    """Deterministic init matching the torch module: Linear weights ~ N(0, 0.001), bias = 0."""
    k1, k2, k3, k4 = jax.random.split(key, 4)
    wq = 0.001 * jax.random.normal(k1, (h * d_k, d_model), jnp.float32)
    wk = 0.001 * jax.random.normal(k2, (h * d_k, d_model), jnp.float32)
    wv = 0.001 * jax.random.normal(k3, (h * d_v, d_v), jnp.float32)
    wo = 0.001 * jax.random.normal(k4, (d_model, h * d_v), jnp.float32)
    bq = jnp.zeros((h * d_k,), jnp.float32)
    bk = jnp.zeros((h * d_k,), jnp.float32)
    bv = jnp.zeros((h * d_v,), jnp.float32)
    bo = jnp.zeros((d_model,), jnp.float32)
    return (wq, bq, wk, bk, wv, bv, wo, bo)


def _reference_forward(text, params, *, h, d_k, d_v):
    """Pure-JAX mirror of the PyTorch forward (dropout in eval mode)."""
    b_s, p, _, d_model = text.shape
    t = text.reshape(b_s, p, d_model).astype(jnp.float32)
    wq, bq, wk, bk, wv, bv, wo, bo = params

    def attn(query, key, value):
        nq, nk = query.shape[1], key.shape[1]
        q = (query @ wq.T + bq).reshape(b_s, nq, h, d_k).transpose(0, 2, 1, 3)
        k = (key @ wk.T + bk).reshape(b_s, nk, h, d_k).transpose(0, 2, 3, 1)
        v = (value @ wv.T + bv).reshape(b_s, nk, h, d_v).transpose(0, 2, 1, 3)
        att = jnp.matmul(q, k) / jnp.sqrt(jnp.float32(d_k))
        att = jax.nn.softmax(att, axis=-1)
        out = jnp.matmul(att, v).transpose(0, 2, 1, 3).reshape(b_s, nq, h * d_v)
        return out @ wo.T + bo

    key = t[:, 0:1, :]
    value = jnp.concatenate([key, key], axis=-1)
    output = attn(t[:, 1:2, :], key, value)
    for i in range(2, p):
        value = jnp.concatenate([key, output], axis=-1)
        output = attn(t[:, i:i + 1, :], key, value)
    return jnp.maximum(output, 0.0)[:, 0, :]


if __name__ == "__main__":
    # Small shapes consistent with the module: semantic_feat == d_model,
    # d_v must be 2 * d_model for the torch forward to typecheck.
    b_s, p = 2, 8
    d_model, d_k, h = 32, 16, 8
    d_v = 2 * d_model

    root = jax.random.PRNGKey(0)
    k_text, k_params = jax.random.split(root)
    text = jax.random.normal(k_text, (b_s, p, 1, d_model), jnp.float32)
    params = _init_params(k_params, d_model, d_k, d_v, h)

    out = text_attention_layer_forward(text, params, h=h, d_k=d_k, d_v=d_v)
    out = jax.block_until_ready(out)

    ref = _reference_forward(text, params, h=h, d_k=d_k, d_v=d_v)
    assert out.shape == (b_s, d_model)
    assert jnp.allclose(out, ref, atol=1e-5, rtol=1e-5), "mismatch vs reference"

    print("KERNEL_OK")
</pallas_src>

<mosaic_0001>
module attributes {stable_mosaic.version = 11 : i64} {
  func.func @_fused_recurrence_kernel(%arg0: i32, %arg1: memref<8x128xf32, #tpu.memory_space<vmem>>, %arg2: memref<128x128xf32, #tpu.memory_space<vmem>>, %arg3: memref<128x128xf32, #tpu.memory_space<vmem>>, %arg4: memref<1x128xf32, #tpu.memory_space<vmem>>, %arg5: memref<8x128xf32, #tpu.memory_space<vmem>>) attributes {dimension_semantics = [#tpu.dimension_semantics<parallel>], iteration_bounds = array<i64: 1>, scalar_prefetch = 0 : i64, scratch_operands = 0 : i64, tpu.core_type = #tpu.core_type<tc>, window_params = [{transform_indices = @transform_0, window_bounds = array<i64: 8, 128>}, {pipeline_mode = #tpu.pipeline_mode<synchronous>, transform_indices = @transform_1, window_bounds = array<i64: 128, 128>}, {pipeline_mode = #tpu.pipeline_mode<synchronous>, transform_indices = @transform_2, window_bounds = array<i64: 128, 128>}, {pipeline_mode = #tpu.pipeline_mode<synchronous>, transform_indices = @transform_3, window_bounds = array<i64: 1, 128>}, {transform_indices = @transform_4, window_bounds = array<i64: 8, 128>}]} {
    %c0 = arith.constant 0 : index
    %c0_0 = arith.constant 0 : index
    %0 = vector.load %arg1[%c0, %c0_0] : memref<8x128xf32, #tpu.memory_space<vmem>>, vector<8x128xf32>
    %c0_1 = arith.constant 0 : index
    %c0_2 = arith.constant 0 : index
    %1 = vector.load %arg3[%c0_1, %c0_2] : memref<128x128xf32, #tpu.memory_space<vmem>>, vector<128x128xf32>
    %c0_3 = arith.constant 0 : index
    %c0_4 = arith.constant 0 : index
    %2 = vector.load %arg2[%c0_3, %c0_4] : memref<128x128xf32, #tpu.memory_space<vmem>>, vector<128x128xf32>
    %cst = arith.constant dense<0.000000e+00> : vector<8x128xf32>
    %3 = tpu.matmul %0, %2, %cst {dimension_numbers = #tpu.dot_dimension_numbers<[1], [0], [0], [1], [0, 0, 1, 1], [], []>} : vector<8x128xf32>, vector<128x128xf32>, vector<8x128xf32> -> vector<8x128xf32>
    %c0_5 = arith.constant 0 : index
    %c0_6 = arith.constant 0 : index
    %4 = vector.load %arg4[%c0_5, %c0_6] : memref<1x128xf32, #tpu.memory_space<vmem>>, vector<1x128xf32>
    %5 = vector.broadcast %4 : vector<1x128xf32> to vector<8x128xf32>
    %6 = arith.addf %3, %5 : vector<8x128xf32>
    %cst_7 = arith.constant dense<0.000000e+00> : vector<8x128xf32>
    %7 = tpu.matmul %0, %1, %cst_7 {dimension_numbers = #tpu.dot_dimension_numbers<[1], [0], [0], [1], [0, 0, 1, 1], [], []>} : vector<8x128xf32>, vector<128x128xf32>, vector<8x128xf32> -> vector<8x128xf32>
    %8 = arith.addf %6, %7 : vector<8x128xf32>
    %cst_8 = arith.constant dense<0.000000e+00> : vector<8x128xf32>
    %9 = tpu.matmul %8, %1, %cst_8 {dimension_numbers = #tpu.dot_dimension_numbers<[1], [0], [0], [1], [0, 0, 1, 1], [], []>} : vector<8x128xf32>, vector<128x128xf32>, vector<8x128xf32> -> vector<8x128xf32>
    %10 = arith.addf %6, %9 : vector<8x128xf32>
    %cst_9 = arith.constant dense<0.000000e+00> : vector<8x128xf32>
    %11 = tpu.matmul %10, %1, %cst_9 {dimension_numbers = #tpu.dot_dimension_numbers<[1], [0], [0], [1], [0, 0, 1, 1], [], []>} : vector<8x128xf32>, vector<128x128xf32>, vector<8x128xf32> -> vector<8x128xf32>
    %12 = arith.addf %6, %11 : vector<8x128xf32>
    %cst_10 = arith.constant dense<0.000000e+00> : vector<8x128xf32>
    %13 = tpu.matmul %12, %1, %cst_10 {dimension_numbers = #tpu.dot_dimension_numbers<[1], [0], [0], [1], [0, 0, 1, 1], [], []>} : vector<8x128xf32>, vector<128x128xf32>, vector<8x128xf32> -> vector<8x128xf32>
    %14 = arith.addf %6, %13 : vector<8x128xf32>
    %cst_11 = arith.constant dense<0.000000e+00> : vector<8x128xf32>
    %15 = tpu.matmul %14, %1, %cst_11 {dimension_numbers = #tpu.dot_dimension_numbers<[1], [0], [0], [1], [0, 0, 1, 1], [], []>} : vector<8x128xf32>, vector<128x128xf32>, vector<8x128xf32> -> vector<8x128xf32>
    %16 = arith.addf %6, %15 : vector<8x128xf32>
    %cst_12 = arith.constant dense<0.000000e+00> : vector<8x128xf32>
    %17 = tpu.matmul %16, %1, %cst_12 {dimension_numbers = #tpu.dot_dimension_numbers<[1], [0], [0], [1], [0, 0, 1, 1], [], []>} : vector<8x128xf32>, vector<128x128xf32>, vector<8x128xf32> -> vector<8x128xf32>
    %18 = arith.addf %6, %17 : vector<8x128xf32>
    %cst_13 = arith.constant dense<0.000000e+00> : vector<8x128xf32>
    %19 = tpu.matmul %18, %1, %cst_13 {dimension_numbers = #tpu.dot_dimension_numbers<[1], [0], [0], [1], [0, 0, 1, 1], [], []>} : vector<8x128xf32>, vector<128x128xf32>, vector<8x128xf32> -> vector<8x128xf32>
    %20 = arith.addf %6, %19 : vector<8x128xf32>
    %cst_14 = arith.constant 0.000000e+00 : f32
    %21 = vector.broadcast %cst_14 : f32 to vector<8x128xf32>
    %22 = arith.maximumf %20, %21 : vector<8x128xf32>
    %c0_15 = arith.constant 0 : index
    %c0_16 = arith.constant 0 : index
    %23 = vector.load %arg5[%c0_15, %c0_16] : memref<8x128xf32, #tpu.memory_space<vmem>>, vector<8x128xf32>
    tpu.vector_store %arg5[%c0_15, %c0_16], %22 {strides = array<i32>} : memref<8x128xf32, #tpu.memory_space<vmem>>, vector<8x128xf32>,
    return
  }
  func.func @transform_0(%arg0: i32) -> (i32, i32) {
    %c0_i32 = arith.constant 0 : i32
    %c0_i32_0 = arith.constant 0 : i32
    return %arg0, %c0_i32 : i32, i32
  }
  func.func @transform_1(%arg0: i32) -> (i32, i32) {
    %c0_i32 = arith.constant 0 : i32
    %c0_i32_0 = arith.constant 0 : i32
    %c0_i32_1 = arith.constant 0 : i32
    return %c0_i32, %c0_i32_0 : i32, i32
  }
  func.func @transform_2(%arg0: i32) -> (i32, i32) {
    %c0_i32 = arith.constant 0 : i32
    %c0_i32_0 = arith.constant 0 : i32
    %c0_i32_1 = arith.constant 0 : i32
    return %c0_i32, %c0_i32_0 : i32, i32
  }
  func.func @transform_3(%arg0: i32) -> (i32, i32) {
    %c0_i32 = arith.constant 0 : i32
    %c0_i32_0 = arith.constant 0 : i32
    %c0_i32_1 = arith.constant 0 : i32
    return %c0_i32, %c0_i32_0 : i32, i32
  }
  func.func @transform_4(%arg0: i32) -> (i32, i32) {
    %c0_i32 = arith.constant 0 : i32
    %c0_i32_0 = arith.constant 0 : i32
    return %arg0, %c0_i32 : i32, i32
  }
}

</mosaic_0001>

<llo_original>
// kernel: tpu_custom_call.1
$region0: #{tpu_custom_call.1}
  #allocation0 [shape = 'u32[]', space=smem, size = 0x4, offset = 0x4, fixed_abs, tag = 'smem constant byte address 0x4 - core index']
  #allocation1 [shape = 'u32[72,128]{1,0:T(1,128)}', space=vmem, size = 0x9000, scoped, tag = 'internal scratch']
  %s0 = inlined_call_operand.hbm [shape: f32[8,128], index: 0, kind: input, shape index: {}]
  %s1 = inlined_call_operand.hbm [shape: f32[128,128], index: 1, kind: input, shape index: {}]
  %s2 = inlined_call_operand.hbm [shape: f32[128,128], index: 2, kind: input, shape index: {}]
  %s3 = inlined_call_operand.vmem [shape: f32[1,128], index: 3, kind: input, shape index: {}]
  %s4 = inlined_call_operand.hbm [shape: f32[8,128], index: 4, kind: output, shape index: {}]
  %s5 = sld [smem:[#allocation0]]
  $region38: #{tpu_custom_call.1} parent=0
    _
  %s7 = ssub.s32 1, %s5
  %s8 = scalar_select 0, %s7, %s5
  $region1: #{tpu_custom_call.1} parent=0
    #allocation2 [shape = 'u8[4096]{0}', space=vmem, size = 0x1000, scoped, tag = 'input window, operand 0, single buffered']
    #allocation3 [shape = 's32[1]{0}', space=sflag, size = 0x4, scoped, tag = 'scoped memory for tpu_custom_call.1']
    #allocation4 [shape = 's32[1]{0}', space=sflag, size = 0x4, scoped, tag = 'scoped memory for tpu_custom_call.1']
    #allocation5 [shape = 'u8[65536]{0}', space=vmem, size = 0x10000, scoped, tag = 'input window, operand 1, single buffered']
    #allocation6 [shape = 's32[1]{0}', space=sflag, size = 0x4, scoped, tag = 'scoped memory for tpu_custom_call.1']
    #allocation7 [shape = 'u8[65536]{0}', space=vmem, size = 0x10000, scoped, tag = 'input window, operand 2, single buffered']
    #allocation8 [shape = 'u8[4096]{0}', space=vmem, size = 0x1000, scoped, tag = 'output window, operand 0, single buffered']
    %9 = vsyncpa [#allocation3], 0
    %10 = vsyncpa [#allocation6], 0
    %11 = vsyncpa [#allocation4], 0
    // Predicated region
    $region2: #{tpu_custom_call.1} parent=1 // pred_check
      _
    $region3: #{tpu_custom_call.1} parent=1 // pred_check_branch
      %13 = sbr.rel (0) target = $region5
    $region4: #{tpu_custom_call.1} parent=1 // pred_region
      %15 = vsyncadd [#allocation3], 0
      %s17 = sshll.u32 %s0, 4
      %s18 = int_to_ptr.hbm [resolvable:$true] %s17
      %s19 = sshll.u32 [#allocation2], 4
      %s20 = int_to_ptr.vmem [resolvable:$true] %s19
      %22 = dma.hbm_to_vmem [thread:$0]  %s18, 128, %s20, [#allocation3]
    $region5: #{tpu_custom_call.1} parent=1 // pred_fallthru
      _
    // Predicated region
    $region6: #{tpu_custom_call.1} parent=1 // pred_check
      _
    $region7: #{tpu_custom_call.1} parent=1 // pred_check_branch
      %24 = sbr.rel (0) target = $region9
    $region8: #{tpu_custom_call.1} parent=1 // pred_region
      %26 = vsyncadd [#allocation6], 0
      %s27 = sshll.u32 %s1, 4
      %s28 = int_to_ptr.hbm [resolvable:$true] %s27
      %s29 = sshll.u32 [#allocation5], 4
      %s30 = int_to_ptr.vmem [resolvable:$true] %s29
      %35 = dma.hbm_to_vmem [thread:$0]  %s28, 2048, %s30, [#allocation6], 128, 128, 8
    $region9: #{tpu_custom_call.1} parent=1 // pred_fallthru
      _
    // Predicated region
    $region10: #{tpu_custom_call.1} parent=1 // pred_check
      _
    $region11: #{tpu_custom_call.1} parent=1 // pred_check_branch
      %37 = sbr.rel (0) target = $region13
    $region12: #{tpu_custom_call.1} parent=1 // pred_region
      %39 = vsyncadd [#allocation6], 0
      %s40 = sshll.u32 %s2, 4
      %s41 = int_to_ptr.hbm [resolvable:$true] %s40
      %s42 = sshll.u32 [#allocation7], 4
      %s43 = int_to_ptr.vmem [resolvable:$true] %s42
      %48 = dma.hbm_to_vmem [thread:$0]  %s41, 2048, %s43, [#allocation6], 128, 128, 8
    $region13: #{tpu_custom_call.1} parent=1 // pred_fallthru
      _
    // Predicated region
    $region14: #{tpu_custom_call.1} parent=1 // pred_check
      _
    $region15: #{tpu_custom_call.1} parent=1 // pred_check_branch
      %50 = sbr.rel (0) target = $region17
    $region16: #{tpu_custom_call.1} parent=1 // pred_region
      _
    $region17: #{tpu_custom_call.1} parent=1 // pred_fallthru
      _
    // Predicated region
    $region18: #{tpu_custom_call.1} parent=1 // pred_check
      _
    $region19: #{tpu_custom_call.1} parent=1 // pred_check_branch
      %52 = sbr.rel (0) target = $region21
    $region20: #{tpu_custom_call.1} parent=1 // pred_region
      %54 = dma.done [#allocation3], 128
    $region21: #{tpu_custom_call.1} parent=1 // pred_fallthru
      _
    // Predicated region
    $region22: #{tpu_custom_call.1} parent=1 // pred_check
      _
    $region23: #{tpu_custom_call.1} parent=1 // pred_check_branch
      %56 = sbr.rel (0) target = $region25
    $region24: #{tpu_custom_call.1} parent=1 // pred_region
      %58 = dma.done [#allocation6], 2048
    $region25: #{tpu_custom_call.1} parent=1 // pred_fallthru
      _
    // Predicated region
    $region26: #{tpu_custom_call.1} parent=1 // pred_check
      _
    $region27: #{tpu_custom_call.1} parent=1 // pred_check_branch
      %60 = sbr.rel (0) target = $region29
    $region28: #{tpu_custom_call.1} parent=1 // pred_region
      %62 = dma.done [#allocation6], 2048
    $region29: #{tpu_custom_call.1} parent=1 // pred_fallthru
      _
    %v63 = vld [vmem:[#allocation2] sm:$0xff]
    %v64 = vld [vmem:[#allocation7] sm:$0xff]
    %v65 = vld [vmem:[#allocation7 + $0x8] sm:$0xff]
    %v66 = vld [vmem:[#allocation7 + $0x10] sm:$0xff]
    %v67 = vld [vmem:[#allocation7 + $0x18] sm:$0xff]
    %v68 = vld [vmem:[#allocation7 + $0x20] sm:$0xff]
    %v69 = vld [vmem:[#allocation7 + $0x28] sm:$0xff]
    %v70 = vld [vmem:[#allocation7 + $0x30] sm:$0xff]
    %v71 = vld [vmem:[#allocation7 + $0x38] sm:$0xff]
    %v72 = vld [vmem:[#allocation7 + $0x40] sm:$0xff]
    %v73 = vld [vmem:[#allocation7 + $0x48] sm:$0xff]
    %v74 = vld [vmem:[#allocation7 + $0x50] sm:$0xff]
    %v75 = vld [vmem:[#allocation7 + $0x58] sm:$0xff]
    %v76 = vld [vmem:[#allocation7 + $0x60] sm:$0xff]
    %v77 = vld [vmem:[#allocation7 + $0x68] sm:$0xff]
    %v78 = vld [vmem:[#allocation7 + $0x70] sm:$0xff]
    %v79 = vld [vmem:[#allocation7 + $0x78] sm:$0xff]
    %v80 = vld [vmem:[#allocation5] sm:$0xff]
    %v81 = vld [vmem:[#allocation5 + $0x8] sm:$0xff]
    %v82 = vld [vmem:[#allocation5 + $0x10] sm:$0xff]
    %v83 = vld [vmem:[#allocation5 + $0x18] sm:$0xff]
    %v84 = vld [vmem:[#allocation5 + $0x20] sm:$0xff]
    %v85 = vld [vmem:[#allocation5 + $0x28] sm:$0xff]
    %v86 = vld [vmem:[#allocation5 + $0x30] sm:$0xff]
    %v87 = vld [vmem:[#allocation5 + $0x38] sm:$0xff]
    %v88 = vld [vmem:[#allocation5 + $0x40] sm:$0xff]
    %v89 = vld [vmem:[#allocation5 + $0x48] sm:$0xff]
    %v90 = vld [vmem:[#allocation5 + $0x50] sm:$0xff]
    %v91 = vld [vmem:[#allocation5 + $0x58] sm:$0xff]
    %v92 = vld [vmem:[#allocation5 + $0x60] sm:$0xff]
    %v93 = vld [vmem:[#allocation5 + $0x68] sm:$0xff]
    %v94 = vld [vmem:[#allocation5 + $0x70] sm:$0xff]
    %v95 = vld [vmem:[#allocation5 + $0x78] sm:$0xff]
    %v96 = vld [vmem:[%s3] sm:$0x1]
    %v98 = vperm.slane %v96, 0
    %100 = vmatpush.msra.mxu0 %v95
    %101 = vmatpush.msra.mxu0 %v94
    %102 = vmatpush.msra.mxu0 %v93
    %103 = vmatpush.msra.mxu0 %v92
    %104 = vmatpush.msra.mxu0 %v91
    %105 = vmatpush.msra.mxu0 %v90
    %106 = vmatpush.msra.mxu0 %v89
    %107 = vmatpush.msra.mxu0 %v88
    %108 = vmatpush.msra.mxu0 %v87
    %109 = vmatpush.msra.mxu0 %v86
    %110 = vmatpush.msra.mxu0 %v85
    %111 = vmatpush.msra.mxu0 %v84
    %112 = vmatpush.msra.mxu0 %v83
    %113 = vmatpush.msra.mxu0 %v82
    %114 = vmatpush.msra.mxu0 %v81
    %115 = vmatpush.msra.mxu0 %v80
    %116 = vmatmul.f32.gmra.mxu0 %v63
    %v117 = vpop.f32.mrf.mxu0
    %v118 = vadd.f32 %v98, %v117
    %119 = vdwg.mxu0
    %120 = vmatpush.msra.mxu0 %v79
    %121 = vmatpush.msra.mxu0 %v78
    %122 = vmatpush.msra.mxu0 %v77
    %123 = vmatpush.msra.mxu0 %v76
    %124 = vmatpush.msra.mxu0 %v75
    %125 = vmatpush.msra.mxu0 %v74
    %126 = vmatpush.msra.mxu0 %v73
    %127 = vmatpush.msra.mxu0 %v72
    %128 = vmatpush.msra.mxu0 %v71
    %129 = vmatpush.msra.mxu0 %v70
    %130 = vmatpush.msra.mxu0 %v69
    %131 = vmatpush.msra.mxu0 %v68
    %132 = vmatpush.msra.mxu0 %v67
    %133 = vmatpush.msra.mxu0 %v66
    %134 = vmatpush.msra.mxu0 %v65
    %135 = vmatpush.msra.mxu0 %v64
    %136 = vmatmul.f32.gmra.mxu0 %v63
    %v137 = vpop.f32.mrf.mxu0
    %v138 = vadd.f32 0.0, %v137
    %139 = vdwg.mxu0
    %v140 = vadd.f32 %v118, %v138
    %141 = vmatpush.msra.mxu0 %v79
    %142 = vmatpush.msra.mxu0 %v78
    %143 = vmatpush.msra.mxu0 %v77
    %144 = vmatpush.msra.mxu0 %v76
    %145 = vmatpush.msra.mxu0 %v75
    %146 = vmatpush.msra.mxu0 %v74
    %147 = vmatpush.msra.mxu0 %v73
    %148 = vmatpush.msra.mxu0 %v72
    %149 = vmatpush.msra.mxu0 %v71
    %150 = vmatpush.msra.mxu0 %v70
    %151 = vmatpush.msra.mxu0 %v69
    %152 = vmatpush.msra.mxu0 %v68
    %153 = vmatpush.msra.mxu0 %v67
    %154 = vmatpush.msra.mxu0 %v66
    %155 = vmatpush.msra.mxu0 %v65
    %156 = vmatpush.msra.mxu0 %v64
    %157 = vmatmul.f32.gmra.mxu0 %v140
    %v158 = vpop.f32.mrf.mxu0
    %v159 = vadd.f32 0.0, %v158
    %160 = vdwg.mxu0
    %v161 = vadd.f32 %v118, %v159
    %162 = vmatpush.msra.mxu0 %v79
    %163 = vmatpush.msra.mxu0 %v78
    %164 = vmatpush.msra.mxu0 %v77
    %165 = vmatpush.msra.mxu0 %v76
    %166 = vmatpush.msra.mxu0 %v75
    %167 = vmatpush.msra.mxu0 %v74
    %168 = vmatpush.msra.mxu0 %v73
    %169 = vmatpush.msra.mxu0 %v72
    %170 = vmatpush.msra.mxu0 %v71
    %171 = vmatpush.msra.mxu0 %v70
    %172 = vmatpush.msra.mxu0 %v69
    %173 = vmatpush.msra.mxu0 %v68
    %174 = vmatpush.msra.mxu0 %v67
    %175 = vmatpush.msra.mxu0 %v66
    %176 = vmatpush.msra.mxu0 %v65
    %177 = vmatpush.msra.mxu0 %v64
    %178 = vmatmul.f32.gmra.mxu0 %v161
    %v179 = vpop.f32.mrf.mxu0
    %v180 = vadd.f32 0.0, %v179
    %181 = vdwg.mxu0
    %v182 = vadd.f32 %v118, %v180
    %183 = vmatpush.msra.mxu0 %v79
    %184 = vmatpush.msra.mxu0 %v78
    %185 = vmatpush.msra.mxu0 %v77
    %186 = vmatpush.msra.mxu0 %v76
    %187 = vmatpush.msra.mxu0 %v75
    %188 = vmatpush.msra.mxu0 %v74
    %189 = vmatpush.msra.mxu0 %v73
    %190 = vmatpush.msra.mxu0 %v72
    %191 = vmatpush.msra.mxu0 %v71
    %192 = vmatpush.msra.mxu0 %v70
    %193 = vmatpush.msra.mxu0 %v69
    %194 = vmatpush.msra.mxu0 %v68
    %195 = vmatpush.msra.mxu0 %v67
    %196 = vmatpush.msra.mxu0 %v66
    %197 = vmatpush.msra.mxu0 %v65
    %198 = vmatpush.msra.mxu0 %v64
    %199 = vmatmul.f32.gmra.mxu0 %v182
    %v200 = vpop.f32.mrf.mxu0
    %v201 = vadd.f32 0.0, %v200
    %202 = vdwg.mxu0
    %v203 = vadd.f32 %v118, %v201
    %204 = vmatpush.msra.mxu0 %v79
    %205 = vmatpush.msra.mxu0 %v78
    %206 = vmatpush.msra.mxu0 %v77
    %207 = vmatpush.msra.mxu0 %v76
    %208 = vmatpush.msra.mxu0 %v75
    %209 = vmatpush.msra.mxu0 %v74
    %210 = vmatpush.msra.mxu0 %v73
    %211 = vmatpush.msra.mxu0 %v72
    %212 = vmatpush.msra.mxu0 %v71
    %213 = vmatpush.msra.mxu0 %v70
    %214 = vmatpush.msra.mxu0 %v69
    %215 = vmatpush.msra.mxu0 %v68
    %216 = vmatpush.msra.mxu0 %v67
    %217 = vmatpush.msra.mxu0 %v66
    %218 = vmatpush.msra.mxu0 %v65
    %219 = vmatpush.msra.mxu0 %v64
    %220 = vmatmul.f32.gmra.mxu0 %v203
    %v221 = vpop.f32.mrf.mxu0
    %v222 = vadd.f32 0.0, %v221
    %223 = vdwg.mxu0
    %v224 = vadd.f32 %v118, %v222
    %225 = vmatpush.msra.mxu0 %v79
    %226 = vmatpush.msra.mxu0 %v78
    %227 = vmatpush.msra.mxu0 %v77
    %228 = vmatpush.msra.mxu0 %v76
    %229 = vmatpush.msra.mxu0 %v75
    %230 = vmatpush.msra.mxu0 %v74
    %231 = vmatpush.msra.mxu0 %v73
    %232 = vmatpush.msra.mxu0 %v72
    %233 = vmatpush.msra.mxu0 %v71
    %234 = vmatpush.msra.mxu0 %v70
    %235 = vmatpush.msra.mxu0 %v69
    %236 = vmatpush.msra.mxu0 %v68
    %237 = vmatpush.msra.mxu0 %v67
    %238 = vmatpush.msra.mxu0 %v66
    %239 = vmatpush.msra.mxu0 %v65
    %240 = vmatpush.msra.mxu0 %v64
    %241 = vmatmul.f32.gmra.mxu0 %v224
    %v242 = vpop.f32.mrf.mxu0
    %v243 = vadd.f32 0.0, %v242
    %244 = vdwg.mxu0
    %v245 = vadd.f32 %v118, %v243
    %246 = vmatpush.msra.mxu0 %v79
    %247 = vmatpush.msra.mxu0 %v78
    %248 = vmatpush.msra.mxu0 %v77
    %249 = vmatpush.msra.mxu0 %v76
    %250 = vmatpush.msra.mxu0 %v75
    %251 = vmatpush.msra.mxu0 %v74
    %252 = vmatpush.msra.mxu0 %v73
    %253 = vmatpush.msra.mxu0 %v72
    %254 = vmatpush.msra.mxu0 %v71
    %255 = vmatpush.msra.mxu0 %v70
    %256 = vmatpush.msra.mxu0 %v69
    %257 = vmatpush.msra.mxu0 %v68
    %258 = vmatpush.msra.mxu0 %v67
    %259 = vmatpush.msra.mxu0 %v66
    %260 = vmatpush.msra.mxu0 %v65
    %261 = vmatpush.msra.mxu0 %v64
    %262 = vmatmul.f32.gmra.mxu0 %v245
    %v263 = vpop.f32.mrf.mxu0
    %v264 = vadd.f32 0.0, %v263
    %265 = vdwg.mxu0
    %v266 = vadd.f32 %v118, %v264
    %v267 = vmax.f32 %v266, 0.0
    %268 = vst [vmem:[#allocation8] sm:$0xff] %v267
    // Predicated region
    $region30: #{tpu_custom_call.1} parent=1 // pred_check
      _
    $region31: #{tpu_custom_call.1} parent=1 // pred_check_branch
      %270 = sbr.rel (0) target = $region33
    $region32: #{tpu_custom_call.1} parent=1 // pred_region
      %272 = vsyncadd [#allocation4], 0
      %s274 = sshll.u32 [#allocation8], 4
      %s275 = int_to_ptr.vmem [resolvable:$true] %s274
      %s276 = sshll.u32 %s4, 4
      %s277 = int_to_ptr.hbm [resolvable:$true] %s276
      %279 = dma.vmem_to_hbm [thread:$0]  %s275, 128, %s277, [#allocation4]
    $region33: #{tpu_custom_call.1} parent=1 // pred_fallthru
      _
    // Predicated region
    $region34: #{tpu_custom_call.1} parent=1 // pred_check
      _
    $region35: #{tpu_custom_call.1} parent=1 // pred_check_branch
      %281 = sbr.rel (0) target = $region37
    $region36: #{tpu_custom_call.1} parent=1 // pred_region
      %283 = dma.done [#allocation4], 128
    $region37: #{tpu_custom_call.1} parent=1 // pred_fallthru
      _
    %284 = vsyncpa [#allocation3], 1
    %285 = vsyncpa [#allocation6], 1
    %286 = vsyncpa [#allocation4], 1

</llo_original>
